<compile_context>
chip_gen: v7x
topology: tpu7x:2x2x1
jax: 0.10.0
libtpu: 0.0.40
codegen_flags: <defaults>
</compile_context>

<pallas_src>
import math
import functools

import jax
import jax.numpy as jnp
from jax.experimental import pallas as pl
from jax.experimental.pallas import tpu as pltpu

D_MODEL = 32
VOCAB = 50

_MAX_OUT_ROWS_PER_TILE = 64  # 64 output rows == 256 tokens when pack == 4


# ----------------------------- Pallas kernel ---------------------------------


def _embed_kernel(ids_ref, table_ref, o_ref, *, pack, vocab):
    """ids_ref: (R, pack) int32;  table_ref: (pack*vocab, pack*d) pre-scaled;
    o_ref: (R, pack*d).  out[r, s*d+dd] = scale * table[ids[r, s], dd]."""
    ids = ids_ref[...]                                        # (R, pack) int32
    r = ids.shape[0]
    k = pack * vocab
    k_iota = jax.lax.broadcasted_iota(jnp.int32, (r, k), 1)   # 0 .. pack*vocab-1
    # Token at slot s hits column s*vocab + id  (slots occupy disjoint ranges,
    # so a plain equality per slot is enough -- no div/mod needed).
    hit = k_iota == ids[:, 0:1]
    for s in range(1, pack):
        hit = jnp.logical_or(hit, k_iota == ids[:, s : s + 1] + s * vocab)
    onehot = hit.astype(table_ref.dtype)                      # (R, pack*vocab)
    # One MXU matmul; scale already folded into the table; single dense store.
    o_ref[...] = jnp.dot(
        onehot, table_ref[...], preferred_element_type=jnp.float32
    ).astype(o_ref.dtype)


def _round_up(x, m):
    return (x + m - 1) // m * m


def embeddings_forward(ids, table):
    """ids: integer array of any shape; table: (VOCAB, D). Returns ids.shape + (D,)."""
    vocab, d = table.shape
    scale = math.sqrt(d)

    # How many tokens fit in one lane-dense (128-wide) output row.
    pack = 128 // d if (d <= 128 and 128 % d == 0) else 1

    orig_shape = ids.shape
    flat = ids.reshape(-1).astype(jnp.int32)
    m = flat.shape[0]

    # Pad token count to a multiple of `pack` (no-op at the test size).
    m2 = _round_up(m, pack)
    if m2 != m:
        flat = jnp.pad(flat, (0, m2 - m))
    r_total = m2 // pack                      # output rows (128 lanes each)

    if r_total <= _MAX_OUT_ROWS_PER_TILE:
        r_tile = r_total                      # single grid step, block == array
        r_pad = r_total
    else:
        r_tile = _MAX_OUT_ROWS_PER_TILE       # 256 tokens / step, multi-step grid
        r_pad = _round_up(r_total, r_tile)
        if r_pad != r_total:
            flat = jnp.pad(flat, (0, (r_pad - r_total) * pack))
    ids2d = flat.reshape(r_pad, pack)

    # Pre-scaled, packed table: kron(I_pack, table) * sqrt(d)  -> (pack*V, pack*d).
    if pack > 1:
        table_block = jnp.kron(jnp.eye(pack, dtype=table.dtype), table) * scale
    else:
        table_block = table * scale
    kb, nb = table_block.shape

    grid = (r_pad // r_tile,)
    kern = functools.partial(_embed_kernel, pack=pack, vocab=vocab)
    out = pl.pallas_call(
        kern,
        out_shape=jax.ShapeDtypeStruct((r_pad, nb), table.dtype),
        grid=grid,
        in_specs=[
            pl.BlockSpec((r_tile, pack), lambda i: (i, 0)),   # token ids tile
            pl.BlockSpec((kb, nb), lambda i: (0, 0)),         # packed table (VMEM-resident)
        ],
        out_specs=pl.BlockSpec((r_tile, nb), lambda i: (i, 0)),
        compiler_params=pltpu.CompilerParams(
            dimension_semantics=("parallel",),
        ),
        cost_estimate=pl.CostEstimate(
            flops=2 * r_pad * kb * nb,
            transcendentals=0,
            bytes_accessed=4 * (r_pad * pack + kb * nb + r_pad * nb),
        ),
    )(ids2d, table_block)

    # (r_pad, pack*d) -> (r_pad*pack, d) is a free row-major reinterpretation.
    out_flat = out.reshape(r_pad * pack, d)
    if r_pad * pack != m:
        out_flat = out_flat[:m]
    return out_flat.reshape(*orig_shape, d)


# ----------------------------- main -------------------------------------------

if __name__ == "__main__":
    key = jax.random.PRNGKey(0)
    k_tab, k_ids = jax.random.split(key)

    B, T = 2, 8
    # nn.Embedding weight (lut) and integer token ids.
    table = 0.02 * jax.random.normal(k_tab, (VOCAB, D_MODEL), jnp.float32)
    tok = jax.random.randint(k_ids, (B, T), 0, VOCAB)

    fwd = jax.jit(embeddings_forward)
    out = jax.block_until_ready(fwd(tok, table))

    # Pure-JAX reference: lut(x) * sqrt(d_model)
    ref = table[tok] * math.sqrt(D_MODEL)

    assert out.shape == (B, T, D_MODEL) and out.dtype == jnp.float32
    assert bool(jnp.all(jnp.isfinite(out)))
    assert bool(jnp.allclose(out, ref, rtol=1e-2, atol=1e-3))
    print("KERNEL_OK")
</pallas_src>

<mosaic_0001>
module attributes {stable_mosaic.version = 11 : i64} {
  func.func @_embed_kernel(%arg0: i32, %arg1: memref<4x4xi32, #tpu.memory_space<vmem>>, %arg2: memref<200x128xf32, #tpu.memory_space<vmem>>, %arg3: memref<4x128xf32, #tpu.memory_space<vmem>>) attributes {dimension_semantics = [#tpu.dimension_semantics<parallel>], iteration_bounds = array<i64: 1>, scalar_prefetch = 0 : i64, scratch_operands = 0 : i64, tpu.core_type = #tpu.core_type<tc>, window_params = [{transform_indices = @transform_0, window_bounds = array<i64: 4, 4>}, {pipeline_mode = #tpu.pipeline_mode<synchronous>, transform_indices = @transform_1, window_bounds = array<i64: 200, 128>}, {transform_indices = @transform_2, window_bounds = array<i64: 4, 128>}]} {
    %c0 = arith.constant 0 : index
    %c0_0 = arith.constant 0 : index
    %0 = vector.load %arg1[%c0, %c0_0] : memref<4x4xi32, #tpu.memory_space<vmem>>, vector<4x4xi32>
    %1 = tpu.iota {dimensions = array<i32: 1>} : vector<4x200xi32>
    %2 = vector.extract_strided_slice %0 {offsets = [0, 0], sizes = [4, 1], strides = [1, 1]} : vector<4x4xi32> to vector<4x1xi32>
    %3 = vector.broadcast %2 : vector<4x1xi32> to vector<4x200xi32>
    %4 = arith.cmpi eq, %1, %3 : vector<4x200xi32>
    %5 = vector.extract_strided_slice %0 {offsets = [0, 1], sizes = [4, 1], strides = [1, 1]} : vector<4x4xi32> to vector<4x1xi32>
    %c50_i32 = arith.constant 50 : i32
    %6 = vector.broadcast %c50_i32 : i32 to vector<4x1xi32>
    %7 = arith.addi %5, %6 : vector<4x1xi32>
    %8 = vector.broadcast %7 : vector<4x1xi32> to vector<4x200xi32>
    %9 = arith.cmpi eq, %1, %8 : vector<4x200xi32>
    %10 = arith.ori %4, %9 : vector<4x200xi1>
    %11 = vector.extract_strided_slice %0 {offsets = [0, 2], sizes = [4, 1], strides = [1, 1]} : vector<4x4xi32> to vector<4x1xi32>
    %c100_i32 = arith.constant 100 : i32
    %12 = vector.broadcast %c100_i32 : i32 to vector<4x1xi32>
    %13 = arith.addi %11, %12 : vector<4x1xi32>
    %14 = vector.broadcast %13 : vector<4x1xi32> to vector<4x200xi32>
    %15 = arith.cmpi eq, %1, %14 : vector<4x200xi32>
    %16 = arith.ori %10, %15 : vector<4x200xi1>
    %17 = vector.extract_strided_slice %0 {offsets = [0, 3], sizes = [4, 1], strides = [1, 1]} : vector<4x4xi32> to vector<4x1xi32>
    %c150_i32 = arith.constant 150 : i32
    %18 = vector.broadcast %c150_i32 : i32 to vector<4x1xi32>
    %19 = arith.addi %17, %18 : vector<4x1xi32>
    %20 = vector.broadcast %19 : vector<4x1xi32> to vector<4x200xi32>
    %21 = arith.cmpi eq, %1, %20 : vector<4x200xi32>
    %22 = arith.ori %16, %21 : vector<4x200xi1>
    %23 = arith.extui %22 : vector<4x200xi1> to vector<4x200xi32>
    %24 = arith.sitofp %23 : vector<4x200xi32> to vector<4x200xf32>
    %c0_1 = arith.constant 0 : index
    %c0_2 = arith.constant 0 : index
    %25 = vector.load %arg2[%c0_1, %c0_2] : memref<200x128xf32, #tpu.memory_space<vmem>>, vector<200x128xf32>
    %cst = arith.constant dense<0.000000e+00> : vector<4x128xf32>
    %26 = tpu.matmul %24, %25, %cst {dimension_numbers = #tpu.dot_dimension_numbers<[1], [0], [0], [1], [0, 0, 1, 1], [], []>} : vector<4x200xf32>, vector<200x128xf32>, vector<4x128xf32> -> vector<4x128xf32>
    %c0_3 = arith.constant 0 : index
    %c0_4 = arith.constant 0 : index
    %27 = vector.load %arg3[%c0_3, %c0_4] : memref<4x128xf32, #tpu.memory_space<vmem>>, vector<4x128xf32>
    tpu.vector_store %arg3[%c0_3, %c0_4], %26 {strides = array<i32>} : memref<4x128xf32, #tpu.memory_space<vmem>>, vector<4x128xf32>,
    return
  }
  func.func @transform_0(%arg0: i32) -> (i32, i32) {
    %c0_i32 = arith.constant 0 : i32
    %c0_i32_0 = arith.constant 0 : i32
    return %arg0, %c0_i32 : i32, i32
  }
  func.func @transform_1(%arg0: i32) -> (i32, i32) {
    %c0_i32 = arith.constant 0 : i32
    %c0_i32_0 = arith.constant 0 : i32
    %c0_i32_1 = arith.constant 0 : i32
    return %c0_i32, %c0_i32_0 : i32, i32
  }
  func.func @transform_2(%arg0: i32) -> (i32, i32) {
    %c0_i32 = arith.constant 0 : i32
    %c0_i32_0 = arith.constant 0 : i32
    return %arg0, %c0_i32 : i32, i32
  }
}

</mosaic_0001>

<llo_original>
// kernel: embeddings_forward.1
$region0: #{embeddings_forward.1}
  #allocation0 [shape = 'u32[]', space=smem, size = 0x4, offset = 0x4, fixed_abs, tag = 'smem constant byte address 0x4 - core index']
  #allocation1 [shape = 'u32[144,128]{1,0:T(1,128)}', space=vmem, size = 0x12000, scoped, tag = 'internal scratch']
  %s0 = inlined_call_operand.vmem [shape: s32[4,4], index: 0, kind: input, shape index: {}]
  %s1 = inlined_call_operand.vmem [shape: f32[200,128], index: 1, kind: input, shape index: {}]
  %s2 = inlined_call_operand.vmem [shape: f32[4,128], index: 2, kind: output, shape index: {}]
  %s3 = sld [smem:[#allocation0]]
  $region18: #{embeddings_forward.1} parent=0
    _
  %s5 = ssub.s32 1, %s3
  %s6 = scalar_select 0, %s5, %s3
  // Predicated region
  $region2: #{embeddings_forward.1} parent=0 // pred_check
    _
  $region3: #{embeddings_forward.1} parent=0 // pred_check_branch
    %8 = sbr.rel (0) target = $region5
  $region4: #{embeddings_forward.1} parent=0 // pred_region
    _
  $region5: #{embeddings_forward.1} parent=0 // pred_fallthru
    _
  // Predicated region
  $region6: #{embeddings_forward.1} parent=0 // pred_check
    _
  $region7: #{embeddings_forward.1} parent=0 // pred_check_branch
    %10 = sbr.rel (0) target = $region9
  $region8: #{embeddings_forward.1} parent=0 // pred_region
    _
  $region9: #{embeddings_forward.1} parent=0 // pred_fallthru
    _
  %v11 = vld [vmem:[%s0] sm:$0xf]
  %v12 = vlaneseq
  %v13 = vand.u32 %v12, 127
  %v14 = vadd.s32 %v13, 128
  %15 = vset.pattern.permute.xlu0 0
  %16 = vperm.xlu0 %15, %v11
  %v17 = vpop.permute.xlu0 %16
  %vm18 = vcmp.eq.s32.totalorder %v13, %v17
  %vm19 = vcmp.eq.s32.totalorder %v14, %v17
  %v20 = vadd.s32 %v11, 50
  %21 = vset.pattern.permute.xlu0 1
  %22 = vperm.xlu0 %21, %v20
  %v23 = vpop.permute.xlu0 %22
  %vm24 = vcmp.eq.s32.totalorder %v13, %v23
  %vm25 = vcmp.eq.s32.totalorder %v14, %v23
  %vm26 = vmor %vm18, %vm24
  %vm27 = vmor %vm19, %vm25
  %v28 = vadd.s32 %v11, 100
  %29 = vset.pattern.permute.xlu0 2
  %30 = vperm.xlu0 %29, %v28
  %v31 = vpop.permute.xlu0 %30
  %vm32 = vcmp.eq.s32.totalorder %v13, %v31
  %vm33 = vcmp.eq.s32.totalorder %v14, %v31
  %vm34 = vmor %vm26, %vm32
  %vm35 = vmor %vm27, %vm33
  %v36 = vadd.s32 %v11, 150
  %37 = vset.pattern.permute.xlu0 3
  %38 = vperm.xlu0 %37, %v36
  %v39 = vpop.permute.xlu0 %38
  %vm40 = vcmp.eq.s32.totalorder %v13, %v39
  %vm41 = vcmp.eq.s32.totalorder %v14, %v39
  %vm42 = vmor %vm34, %vm40
  %vm43 = vmor %vm35, %vm41
  %v44 = vsel %vm42, 1, 0
  %v45 = vsel %vm43, 1, 0
  %v46 = vcvt.s32.f32 %v44
  %v47 = vcvt.s32.f32 %v45
  %v48 = vld [vmem:[%s1] sm:$0xff]
  %v49 = vld [vmem:[%s1 + $0x8] sm:$0xff]
  %v50 = vld [vmem:[%s1 + $0x10] sm:$0xff]
  %v51 = vld [vmem:[%s1 + $0x18] sm:$0xff]
  %v52 = vld [vmem:[%s1 + $0x20] sm:$0xff]
  %v53 = vld [vmem:[%s1 + $0x28] sm:$0xff]
  %v54 = vld [vmem:[%s1 + $0x30] sm:$0xff]
  %v55 = vld [vmem:[%s1 + $0x38] sm:$0xff]
  %v56 = vld [vmem:[%s1 + $0x40] sm:$0xff]
  %v57 = vld [vmem:[%s1 + $0x48] sm:$0xff]
  %v58 = vld [vmem:[%s1 + $0x50] sm:$0xff]
  %v59 = vld [vmem:[%s1 + $0x58] sm:$0xff]
  %v60 = vld [vmem:[%s1 + $0x60] sm:$0xff]
  %v61 = vld [vmem:[%s1 + $0x68] sm:$0xff]
  %v62 = vld [vmem:[%s1 + $0x70] sm:$0xff]
  %v63 = vld [vmem:[%s1 + $0x78] sm:$0xff]
  %v64 = vld [vmem:[%s1 + $0x80] sm:$0xff]
  %v65 = vld [vmem:[%s1 + $0x88] sm:$0xff]
  %v66 = vld [vmem:[%s1 + $0x90] sm:$0xff]
  %v67 = vld [vmem:[%s1 + $0x98] sm:$0xff]
  %v68 = vld [vmem:[%s1 + $0xa0] sm:$0xff]
  %v69 = vld [vmem:[%s1 + $0xa8] sm:$0xff]
  %v70 = vld [vmem:[%s1 + $0xb0] sm:$0xff]
  %v71 = vld [vmem:[%s1 + $0xb8] sm:$0xff]
  %v72 = vld [vmem:[%s1 + $0xc0] sm:$0xff]
  %vm73 = vcmask 588800
  %v75 = vsel %vm73, %v47, 0
  %77 = vmatprep.subr.mxu0 0.0
  %78 = vmatpush1.msra.mxu0 %v48
  %79 = vmatprep.subr.mxu0 0.0
  %80 = vmatpush1.msra.mxu0 %v49
  %81 = vmatprep.subr.mxu0 0.0
  %82 = vmatpush1.msra.mxu0 %v50
  %83 = vmatprep.subr.mxu0 0.0
  %84 = vmatpush1.msra.mxu0 %v51
  %85 = vmatprep.subr.mxu0 0.0
  %86 = vmatpush1.msra.mxu0 %v52
  %87 = vmatprep.subr.mxu0 0.0
  %88 = vmatpush1.msra.mxu0 %v53
  %89 = vmatprep.subr.mxu0 0.0
  %90 = vmatpush1.msra.mxu0 %v54
  %91 = vmatprep.subr.mxu0 0.0
  %92 = vmatpush1.msra.mxu0 %v55
  %93 = vmatprep.subr.mxu0 0.0
  %94 = vmatpush1.msra.mxu0 %v56
  %95 = vmatprep.subr.mxu0 0.0
  %96 = vmatpush1.msra.mxu0 %v57
  %97 = vmatprep.subr.mxu0 0.0
  %98 = vmatpush1.msra.mxu0 %v58
  %99 = vmatprep.subr.mxu0 0.0
  %100 = vmatpush1.msra.mxu0 %v59
  %101 = vmatprep.subr.mxu0 0.0
  %102 = vmatpush1.msra.mxu0 %v60
  %103 = vmatprep.subr.mxu0 0.0
  %104 = vmatpush1.msra.mxu0 %v61
  %105 = vmatprep.subr.mxu0 0.0
  %106 = vmatpush1.msra.mxu0 %v62
  %107 = vmatprep.subr.mxu0 0.0
  %108 = vmatpush1.msra.mxu0 %v63
  %109 = vmatprep.subr.mxu0 0.0
  %110 = vmatpush1.msra.mxu0 %v64
  %111 = vmatprep.subr.mxu0 0.0
  %112 = vmatpush1.msra.mxu0 %v65
  %113 = vmatprep.subr.mxu0 0.0
  %114 = vmatpush1.msra.mxu0 %v66
  %115 = vmatprep.subr.mxu0 0.0
  %116 = vmatpush1.msra.mxu0 %v67
  %117 = vmatprep.subr.mxu0 0.0
  %118 = vmatpush1.msra.mxu0 %v68
  %119 = vmatprep.subr.mxu0 0.0
  %120 = vmatpush1.msra.mxu0 %v69
  %121 = vmatprep.subr.mxu0 0.0
  %122 = vmatpush1.msra.mxu0 %v70
  %123 = vmatprep.subr.mxu0 0.0
  %124 = vmatpush1.msra.mxu0 %v71
  %125 = vmatprep.subr.mxu0 0.0
  %126 = vmatpush1.msra.mxu0 %v72
  %127 = vmatprep.subr.mxu0 0.0
  %128 = vmatpush1.msra.mxu0 0.0
  %129 = vmatprep.subr.mxu0 0.0
  %130 = vmatpush1.msra.mxu0 0.0
  %131 = vmatprep.subr.mxu0 0.0
  %132 = vmatpush1.msra.mxu0 0.0
  %133 = vmatprep.subr.mxu0 0.0
  %134 = vmatpush1.msra.mxu0 0.0
  %135 = vmatprep.subr.mxu0 0.0
  %136 = vmatpush1.msra.mxu0 0.0
  %137 = vmatprep.subr.mxu0 0.0
  %138 = vmatpush1.msra.mxu0 0.0
  %139 = vmatprep.subr.mxu0 0.0
  %140 = vmatpush1.msra.mxu0 0.0
  %141 = vmatprep.mubr.f32.mxu0 %v75
  %142 = vmatmul.mubr.f32.gmra.mrb[0].mxu0 %v46
  %v143 = vpop.f32.mrb[0].mxu0
  %v144 = vadd.f32 0.0, %v143
  %v145 = vpop.f32.mrb[0].mxu0
  %146 = vdwg.mxu0
  %147 = vst [vmem:[%s2] sm:$0xf] %v144
  // Predicated region
  $region10: #{embeddings_forward.1} parent=0 // pred_check
    _
  $region11: #{embeddings_forward.1} parent=0 // pred_check_branch
    %149 = sbr.rel (0) target = $region13
  $region12: #{embeddings_forward.1} parent=0 // pred_region
    _
  $region13: #{embeddings_forward.1} parent=0 // pred_fallthru
    _
  // Predicated region
  $region14: #{embeddings_forward.1} parent=0 // pred_check
    _
  $region15: #{embeddings_forward.1} parent=0 // pred_check_branch
    %151 = sbr.rel (0) target = $region17
  $region16: #{embeddings_forward.1} parent=0 // pred_region
    _
  $region17: #{embeddings_forward.1} parent=0 // pred_fallthru
    _

</llo_original>
